<compile_context>
chip_gen: v7x
topology: tpu7x:2x2x1
jax: 0.10.0
libtpu: 0.0.40
codegen_flags: <defaults>
</compile_context>

<pallas_src>
import functools

import jax
import jax.numpy as jnp
from jax import lax
from jax.experimental import pallas as pl
from jax.experimental.pallas import tpu as pltpu

EMBD = 150  # embd_size in the PyTorch module


def _round_up(n, m):
    return ((n + m - 1) // m) * m


def _memnn_kernel(hops, v_valid, msum_ref, usum_ref, w_ref, out_ref):
    # msum_ref : (hops+1, L, TB, D)  per-(table, sentence) bag-of-words sums
    # usum_ref : (TB, D)             sum over query words of B(query)
    # w_ref    : (D, Vp)             A[-1].weight^T (vocab padded to lanes)
    # out_ref  : (TB, Vp)            softmax probabilities for this batch tile
    n_sent = msum_ref.shape[1]
    u = usum_ref[...].astype(jnp.float32)                        # (TB, D)

    for k in range(hops):
        # Hop attention scores: score[:, l] = <u, m_l>.  L is tiny, so this is
        # a VPU multiply + lane reduce per sentence (MXU would waste issue
        # slots / drain latency for an L-column result).
        cols = []
        for l in range(n_sent):
            m_l = msum_ref[k, l].astype(jnp.float32)              # (TB, D)
            cols.append(jnp.sum(u * m_l, axis=-1, keepdims=True))  # (TB, 1)
        scores = jnp.concatenate(cols, axis=-1)                   # (TB, L)
        scores = scores - jnp.max(scores, axis=-1, keepdims=True)
        e = jnp.exp(scores)
        p = e * pl.reciprocal(jnp.sum(e, axis=-1, keepdims=True), approx=True)
        o = jnp.zeros_like(u)                                     # (TB, D)
        for l in range(n_sent):
            c_l = msum_ref[k + 1, l].astype(jnp.float32)           # (TB, D)
            o = o + p[:, l:l + 1] * c_l
        u = o + u

    # output = softmax(u @ A[-1].weight^T) over the (unpadded) vocab.
    logits = jnp.dot(u.astype(w_ref.dtype), w_ref[...],
                     preferred_element_type=jnp.float32)           # (TB, Vp)
    if logits.shape[-1] > v_valid:                                 # mask vocab pad
        col = lax.broadcasted_iota(jnp.int32, logits.shape, 1)
        logits = jnp.where(col < v_valid, logits, jnp.float32(-1e30))
    logits = logits - jnp.max(logits, axis=-1, keepdims=True)
    e = jnp.exp(logits)
    out_ref[...] = (e * pl.reciprocal(jnp.sum(e, axis=-1, keepdims=True),
                                      approx=True)).astype(out_ref.dtype)


def ans_nn_forward(x, query, A, hops=3, *, batch_tile=128,
                   param_dtype=jnp.bfloat16, out_dtype=jnp.float32):
    """AnsNN forward (eval mode). x:(bs,L,S) int, query:(bs,Q) int, A:(hops+1,V,D)."""
    bs, L, S = x.shape
    nA, V, D = A.shape
    assert nA == hops + 1

    # Wrapper-side bag-of-words pre-reduction: the kernel never sees the
    # (hops+1, bs, L, S, D) gather blow-up.  Gather with x transposed so the
    # result lands directly in (nA, L, bs, D) layout -> trailing (TB, D) block.
    xt = jnp.transpose(x, (1, 0, 2))                       # (L, bs, S)
    msum = jnp.sum(A[:, xt, :], axis=3)                    # (nA, L, bs, D)
    usum = jnp.sum(A[0][query], axis=1)                    # (bs, D)
    W = A[hops].T                                          # (D, V)

    Vp = _round_up(V, 128)                                 # lane-dense logits/output

    # Batch tiling: TB multiple of 8; aim for >=2 grid steps so the
    # ("parallel",) axis can shard across v7x's two TensorCores.
    b8 = _round_up(bs, 8)
    TB = min(batch_tile, b8)
    if b8 > 8 and b8 // TB < 2:
        TB = max(8, _round_up(pl.cdiv(b8, 2), 8))

    pbytes = jnp.dtype(param_dtype).itemsize
    obytes = jnp.dtype(out_dtype).itemsize

    def _vmem_bytes(tb):
        return (2 * nA * L * tb * D * pbytes     # msum tile, double-buffered
                + 2 * tb * D * pbytes            # usum tile, double-buffered
                + 1 * D * Vp * pbytes            # W, single-buffered / resident
                + 2 * tb * Vp * obytes)          # out tile, double-buffered

    try:
        vmem_cap = int(pltpu.get_tpu_info().vmem_capacity_bytes)
    except Exception:
        vmem_cap = 64 * 1024 * 1024              # v7x-safe fallback
    budget = vmem_cap - (16 << 20)               # headroom for compiler scratch
    while TB > 8 and _vmem_bytes(TB) > budget:
        TB = max(8, _round_up(TB // 2, 8))
    Bp = _round_up(bs, TB)
    vmem_limit = int(min(vmem_cap, _vmem_bytes(TB) + (16 << 20)))

    # Cast first (halves the pad copies in the bf16 path), then pad batch/vocab.
    msum = jnp.pad(msum.astype(param_dtype),
                   ((0, 0), (0, 0), (0, Bp - bs), (0, 0)))
    usum = jnp.pad(usum.astype(param_dtype), ((0, Bp - bs), (0, 0)))
    W = jnp.pad(W.astype(param_dtype), ((0, 0), (0, Vp - V)))

    out = pl.pallas_call(
        functools.partial(_memnn_kernel, hops, V),
        out_shape=jax.ShapeDtypeStruct((Bp, Vp), out_dtype),
        grid_spec=pltpu.PrefetchScalarGridSpec(
            num_scalar_prefetch=0,
            grid=(Bp // TB,),
            in_specs=[
                pl.BlockSpec((nA, L, TB, D), lambda b: (0, 0, b, 0)),
                pl.BlockSpec((TB, D), lambda b: (b, 0)),
                # Constant index_map + single buffer: W stays resident and uses
                # half the VMEM it would under the default double-buffering.
                pl.BlockSpec((D, Vp), lambda b: (0, 0),
                             pipeline_mode=pl.Buffered(1)),
            ],
            out_specs=pl.BlockSpec((TB, Vp), lambda b: (b, 0)),
        ),
        compiler_params=pltpu.CompilerParams(
            dimension_semantics=("parallel",),
            vmem_limit_bytes=vmem_limit),
    )(msum, usum, W)
    return out[:bs, :V]


def ans_nn_reference(x, query, A, hops=3):
    """Pure-JAX reference mirroring the PyTorch forward (eval mode)."""
    u = jnp.sum(A[0][query], axis=1)                       # (bs, D)
    for k in range(hops):
        m = jnp.sum(A[k][x], axis=2)                       # (bs, L, D)
        c = jnp.sum(A[k + 1][x], axis=2)                   # (bs, L, D)
        p = jax.nn.softmax(jnp.einsum('bld,bd->bl', m, u), axis=-1)
        o = jnp.einsum('bl,bld->bd', p, c)
        u = o + u
    W = A[hops].T
    return jax.nn.softmax(u @ W, axis=-1)


if __name__ == "__main__":
    key = jax.random.PRNGKey(0)
    Vocab_size, hops = 32, 3
    bs, story_len, s_sent_len, q_len = 2, 5, 6, 7

    k1, k2, k3 = jax.random.split(key, 3)
    # Deterministic parameter init: normal(0, 0.1), padding row 0 zeroed.
    A = 0.1 * jax.random.normal(k1, (hops + 1, Vocab_size, EMBD), dtype=jnp.float32)
    A = A.at[:, 0, :].set(0.0)

    x = jax.random.randint(k2, (bs, story_len, s_sent_len), 0, Vocab_size,
                           dtype=jnp.int32)
    query = jax.random.randint(k3, (bs, q_len), 0, Vocab_size, dtype=jnp.int32)

    ref = ans_nn_reference(x, query, A, hops=hops)

    # f32 parameter path (tolerance covers the EUP approximate reciprocal).
    out_f32 = jax.block_until_ready(
        ans_nn_forward(x, query, A, hops=hops, param_dtype=jnp.float32))
    assert out_f32.shape == (bs, Vocab_size)
    assert jnp.allclose(out_f32, ref, atol=2e-3, rtol=2e-3), "f32 mismatch vs reference"

    # bf16 (default) parameter path: half the HBM/DMA bytes, f32 accumulation.
    out_bf16 = jax.block_until_ready(ans_nn_forward(x, query, A, hops=hops))
    assert out_bf16.shape == (bs, Vocab_size)
    assert jnp.allclose(out_bf16, ref, atol=2e-2, rtol=2e-2), "bf16 mismatch vs reference"

    print("KERNEL_OK")
</pallas_src>

<mosaic_0001>
module attributes {stable_mosaic.version = 11 : i64} {
  func.func @_memnn_kernel(%arg0: i32, %arg1: memref<4x5x8x150xf32, #tpu.memory_space<vmem>>, %arg2: memref<8x150xf32, #tpu.memory_space<vmem>>, %arg3: memref<150x128xf32, #tpu.memory_space<vmem>>, %arg4: memref<8x128xf32, #tpu.memory_space<vmem>>) attributes {dimension_semantics = [#tpu.dimension_semantics<parallel>], iteration_bounds = array<i64: 1>, scalar_prefetch = 0 : i64, scratch_operands = 0 : i64, tpu.core_type = #tpu.core_type<tc>, window_params = [{transform_indices = @transform_0, window_bounds = array<i64: 4, 5, 8, 150>}, {transform_indices = @transform_1, window_bounds = array<i64: 8, 150>}, {pipeline_mode = #tpu.pipeline_mode<synchronous>, transform_indices = @transform_2, window_bounds = array<i64: 150, 128>}, {transform_indices = @transform_3, window_bounds = array<i64: 8, 128>}]} {
    %c0 = arith.constant 0 : index
    %c0_0 = arith.constant 0 : index
    %0 = vector.load %arg2[%c0, %c0_0] : memref<8x150xf32, #tpu.memory_space<vmem>>, vector<8x150xf32>
    %c0_1 = arith.constant 0 : index
    %c0_2 = arith.constant 0 : index
    %c0_3 = arith.constant 0 : index
    %c0_4 = arith.constant 0 : index
    %1 = vector.load %arg1[%c0_1, %c0_2, %c0_3, %c0_4] : memref<4x5x8x150xf32, #tpu.memory_space<vmem>>, vector<1x1x8x150xf32>
    %2 = vector.shape_cast %1 : vector<1x1x8x150xf32> to vector<8x150xf32>
    %3 = arith.mulf %0, %2 : vector<8x150xf32>
    %cst = arith.constant dense<0.000000e+00> : vector<8xf32>
    %4 = vector.multi_reduction <add>, %3, %cst [1] : vector<8x150xf32> to vector<8xf32>
    %5 = vector.shape_cast %4 : vector<8xf32> to vector<8x1xf32>
    %c0_5 = arith.constant 0 : index
    %c1 = arith.constant 1 : index
    %c0_6 = arith.constant 0 : index
    %c0_7 = arith.constant 0 : index
    %6 = vector.load %arg1[%c0_5, %c1, %c0_6, %c0_7] : memref<4x5x8x150xf32, #tpu.memory_space<vmem>>, vector<1x1x8x150xf32>
    %7 = vector.shape_cast %6 : vector<1x1x8x150xf32> to vector<8x150xf32>
    %8 = arith.mulf %0, %7 : vector<8x150xf32>
    %cst_8 = arith.constant dense<0.000000e+00> : vector<8xf32>
    %9 = vector.multi_reduction <add>, %8, %cst_8 [1] : vector<8x150xf32> to vector<8xf32>
    %10 = vector.shape_cast %9 : vector<8xf32> to vector<8x1xf32>
    %c0_9 = arith.constant 0 : index
    %c2 = arith.constant 2 : index
    %c0_10 = arith.constant 0 : index
    %c0_11 = arith.constant 0 : index
    %11 = vector.load %arg1[%c0_9, %c2, %c0_10, %c0_11] : memref<4x5x8x150xf32, #tpu.memory_space<vmem>>, vector<1x1x8x150xf32>
    %12 = vector.shape_cast %11 : vector<1x1x8x150xf32> to vector<8x150xf32>
    %13 = arith.mulf %0, %12 : vector<8x150xf32>
    %cst_12 = arith.constant dense<0.000000e+00> : vector<8xf32>
    %14 = vector.multi_reduction <add>, %13, %cst_12 [1] : vector<8x150xf32> to vector<8xf32>
    %15 = vector.shape_cast %14 : vector<8xf32> to vector<8x1xf32>
    %c0_13 = arith.constant 0 : index
    %c3 = arith.constant 3 : index
    %c0_14 = arith.constant 0 : index
    %c0_15 = arith.constant 0 : index
    %16 = vector.load %arg1[%c0_13, %c3, %c0_14, %c0_15] : memref<4x5x8x150xf32, #tpu.memory_space<vmem>>, vector<1x1x8x150xf32>
    %17 = vector.shape_cast %16 : vector<1x1x8x150xf32> to vector<8x150xf32>
    %18 = arith.mulf %0, %17 : vector<8x150xf32>
    %cst_16 = arith.constant dense<0.000000e+00> : vector<8xf32>
    %19 = vector.multi_reduction <add>, %18, %cst_16 [1] : vector<8x150xf32> to vector<8xf32>
    %20 = vector.shape_cast %19 : vector<8xf32> to vector<8x1xf32>
    %c0_17 = arith.constant 0 : index
    %c4 = arith.constant 4 : index
    %c0_18 = arith.constant 0 : index
    %c0_19 = arith.constant 0 : index
    %21 = vector.load %arg1[%c0_17, %c4, %c0_18, %c0_19] : memref<4x5x8x150xf32, #tpu.memory_space<vmem>>, vector<1x1x8x150xf32>
    %22 = vector.shape_cast %21 : vector<1x1x8x150xf32> to vector<8x150xf32>
    %23 = arith.mulf %0, %22 : vector<8x150xf32>
    %cst_20 = arith.constant dense<0.000000e+00> : vector<8xf32>
    %24 = vector.multi_reduction <add>, %23, %cst_20 [1] : vector<8x150xf32> to vector<8xf32>
    %25 = vector.shape_cast %24 : vector<8xf32> to vector<8x1xf32>
    %26 = tpu.concatenate %5, %10, %15, %20, %25 in 1 : vector<8x1xf32>, vector<8x1xf32>, vector<8x1xf32>, vector<8x1xf32>, vector<8x1xf32> -> vector<8x5xf32>
    %cst_21 = arith.constant dense<0xFF800000> : vector<8xf32>
    %27 = vector.multi_reduction <maximumf>, %26, %cst_21 [1] : vector<8x5xf32> to vector<8xf32>
    %28 = vector.shape_cast %27 : vector<8xf32> to vector<8x1xf32>
    %29 = vector.broadcast %28 : vector<8x1xf32> to vector<8x5xf32>
    %30 = arith.subf %26, %29 : vector<8x5xf32>
    %31 = math.exp %30 : vector<8x5xf32>
    %cst_22 = arith.constant dense<0.000000e+00> : vector<8xf32>
    %32 = vector.multi_reduction <add>, %31, %cst_22 [1] : vector<8x5xf32> to vector<8xf32>
    %33 = vector.shape_cast %32 : vector<8xf32> to vector<8x1xf32>
    %34 = tpu.reciprocal %33 {approx = true} : vector<8x1xf32> -> vector<8x1xf32>
    %35 = vector.broadcast %34 : vector<8x1xf32> to vector<8x5xf32>
    %36 = arith.mulf %31, %35 : vector<8x5xf32>
    %cst_23 = arith.constant 0.000000e+00 : f32
    %37 = vector.broadcast %cst_23 : f32 to vector<8x150xf32>
    %c1_24 = arith.constant 1 : index
    %c0_25 = arith.constant 0 : index
    %c0_26 = arith.constant 0 : index
    %c0_27 = arith.constant 0 : index
    %38 = vector.load %arg1[%c1_24, %c0_25, %c0_26, %c0_27] : memref<4x5x8x150xf32, #tpu.memory_space<vmem>>, vector<1x1x8x150xf32>
    %39 = vector.shape_cast %38 : vector<1x1x8x150xf32> to vector<8x150xf32>
    %40 = vector.extract_strided_slice %36 {offsets = [0, 0], sizes = [8, 1], strides = [1, 1]} : vector<8x5xf32> to vector<8x1xf32>
    %41 = vector.broadcast %40 : vector<8x1xf32> to vector<8x150xf32>
    %42 = arith.mulf %41, %39 : vector<8x150xf32>
    %43 = arith.addf %37, %42 : vector<8x150xf32>
    %c1_28 = arith.constant 1 : index
    %c1_29 = arith.constant 1 : index
    %c0_30 = arith.constant 0 : index
    %c0_31 = arith.constant 0 : index
    %44 = vector.load %arg1[%c1_28, %c1_29, %c0_30, %c0_31] : memref<4x5x8x150xf32, #tpu.memory_space<vmem>>, vector<1x1x8x150xf32>
    %45 = vector.shape_cast %44 : vector<1x1x8x150xf32> to vector<8x150xf32>
    %46 = vector.extract_strided_slice %36 {offsets = [0, 1], sizes = [8, 1], strides = [1, 1]} : vector<8x5xf32> to vector<8x1xf32>
    %47 = vector.broadcast %46 : vector<8x1xf32> to vector<8x150xf32>
    %48 = arith.mulf %47, %45 : vector<8x150xf32>
    %49 = arith.addf %43, %48 : vector<8x150xf32>
    %c1_32 = arith.constant 1 : index
    %c2_33 = arith.constant 2 : index
    %c0_34 = arith.constant 0 : index
    %c0_35 = arith.constant 0 : index
    %50 = vector.load %arg1[%c1_32, %c2_33, %c0_34, %c0_35] : memref<4x5x8x150xf32, #tpu.memory_space<vmem>>, vector<1x1x8x150xf32>
    %51 = vector.shape_cast %50 : vector<1x1x8x150xf32> to vector<8x150xf32>
    %52 = vector.extract_strided_slice %36 {offsets = [0, 2], sizes = [8, 1], strides = [1, 1]} : vector<8x5xf32> to vector<8x1xf32>
    %53 = vector.broadcast %52 : vector<8x1xf32> to vector<8x150xf32>
    %54 = arith.mulf %53, %51 : vector<8x150xf32>
    %55 = arith.addf %49, %54 : vector<8x150xf32>
    %c1_36 = arith.constant 1 : index
    %c3_37 = arith.constant 3 : index
    %c0_38 = arith.constant 0 : index
    %c0_39 = arith.constant 0 : index
    %56 = vector.load %arg1[%c1_36, %c3_37, %c0_38, %c0_39] : memref<4x5x8x150xf32, #tpu.memory_space<vmem>>, vector<1x1x8x150xf32>
    %57 = vector.shape_cast %56 : vector<1x1x8x150xf32> to vector<8x150xf32>
    %58 = vector.extract_strided_slice %36 {offsets = [0, 3], sizes = [8, 1], strides = [1, 1]} : vector<8x5xf32> to vector<8x1xf32>
    %59 = vector.broadcast %58 : vector<8x1xf32> to vector<8x150xf32>
    %60 = arith.mulf %59, %57 : vector<8x150xf32>
    %61 = arith.addf %55, %60 : vector<8x150xf32>
    %c1_40 = arith.constant 1 : index
    %c4_41 = arith.constant 4 : index
    %c0_42 = arith.constant 0 : index
    %c0_43 = arith.constant 0 : index
    %62 = vector.load %arg1[%c1_40, %c4_41, %c0_42, %c0_43] : memref<4x5x8x150xf32, #tpu.memory_space<vmem>>, vector<1x1x8x150xf32>
    %63 = vector.shape_cast %62 : vector<1x1x8x150xf32> to vector<8x150xf32>
    %64 = vector.extract_strided_slice %36 {offsets = [0, 4], sizes = [8, 1], strides = [1, 1]} : vector<8x5xf32> to vector<8x1xf32>
    %65 = vector.broadcast %64 : vector<8x1xf32> to vector<8x150xf32>
    %66 = arith.mulf %65, %63 : vector<8x150xf32>
    %67 = arith.addf %61, %66 : vector<8x150xf32>
    %68 = arith.addf %67, %0 : vector<8x150xf32>
    %c1_44 = arith.constant 1 : index
    %c0_45 = arith.constant 0 : index
    %c0_46 = arith.constant 0 : index
    %c0_47 = arith.constant 0 : index
    %69 = vector.load %arg1[%c1_44, %c0_45, %c0_46, %c0_47] : memref<4x5x8x150xf32, #tpu.memory_space<vmem>>, vector<1x1x8x150xf32>
    %70 = vector.shape_cast %69 : vector<1x1x8x150xf32> to vector<8x150xf32>
    %71 = arith.mulf %68, %70 : vector<8x150xf32>
    %cst_48 = arith.constant dense<0.000000e+00> : vector<8xf32>
    %72 = vector.multi_reduction <add>, %71, %cst_48 [1] : vector<8x150xf32> to vector<8xf32>
    %73 = vector.shape_cast %72 : vector<8xf32> to vector<8x1xf32>
    %c1_49 = arith.constant 1 : index
    %c1_50 = arith.constant 1 : index
    %c0_51 = arith.constant 0 : index
    %c0_52 = arith.constant 0 : index
    %74 = vector.load %arg1[%c1_49, %c1_50, %c0_51, %c0_52] : memref<4x5x8x150xf32, #tpu.memory_space<vmem>>, vector<1x1x8x150xf32>
    %75 = vector.shape_cast %74 : vector<1x1x8x150xf32> to vector<8x150xf32>
    %76 = arith.mulf %68, %75 : vector<8x150xf32>
    %cst_53 = arith.constant dense<0.000000e+00> : vector<8xf32>
    %77 = vector.multi_reduction <add>, %76, %cst_53 [1] : vector<8x150xf32> to vector<8xf32>
    %78 = vector.shape_cast %77 : vector<8xf32> to vector<8x1xf32>
    %c1_54 = arith.constant 1 : index
    %c2_55 = arith.constant 2 : index
    %c0_56 = arith.constant 0 : index
    %c0_57 = arith.constant 0 : index
    %79 = vector.load %arg1[%c1_54, %c2_55, %c0_56, %c0_57] : memref<4x5x8x150xf32, #tpu.memory_space<vmem>>, vector<1x1x8x150xf32>
    %80 = vector.shape_cast %79 : vector<1x1x8x150xf32> to vector<8x150xf32>
    %81 = arith.mulf %68, %80 : vector<8x150xf32>
    %cst_58 = arith.constant dense<0.000000e+00> : vector<8xf32>
    %82 = vector.multi_reduction <add>, %81, %cst_58 [1] : vector<8x150xf32> to vector<8xf32>
    %83 = vector.shape_cast %82 : vector<8xf32> to vector<8x1xf32>
    %c1_59 = arith.constant 1 : index
    %c3_60 = arith.constant 3 : index
    %c0_61 = arith.constant 0 : index
    %c0_62 = arith.constant 0 : index
    %84 = vector.load %arg1[%c1_59, %c3_60, %c0_61, %c0_62] : memref<4x5x8x150xf32, #tpu.memory_space<vmem>>, vector<1x1x8x150xf32>
    %85 = vector.shape_cast %84 : vector<1x1x8x150xf32> to vector<8x150xf32>
    %86 = arith.mulf %68, %85 : vector<8x150xf32>
    %cst_63 = arith.constant dense<0.000000e+00> : vector<8xf32>
    %87 = vector.multi_reduction <add>, %86, %cst_63 [1] : vector<8x150xf32> to vector<8xf32>
    %88 = vector.shape_cast %87 : vector<8xf32> to vector<8x1xf32>
    %c1_64 = arith.constant 1 : index
    %c4_65 = arith.constant 4 : index
    %c0_66 = arith.constant 0 : index
    %c0_67 = arith.constant 0 : index
    %89 = vector.load %arg1[%c1_64, %c4_65, %c0_66, %c0_67] : memref<4x5x8x150xf32, #tpu.memory_space<vmem>>, vector<1x1x8x150xf32>
    %90 = vector.shape_cast %89 : vector<1x1x8x150xf32> to vector<8x150xf32>
    %91 = arith.mulf %68, %90 : vector<8x150xf32>
    %cst_68 = arith.constant dense<0.000000e+00> : vector<8xf32>
    %92 = vector.multi_reduction <add>, %91, %cst_68 [1] : vector<8x150xf32> to vector<8xf32>
    %93 = vector.shape_cast %92 : vector<8xf32> to vector<8x1xf32>
    %94 = tpu.concatenate %73, %78, %83, %88, %93 in 1 : vector<8x1xf32>, vector<8x1xf32>, vector<8x1xf32>, vector<8x1xf32>, vector<8x1xf32> -> vector<8x5xf32>
    %cst_69 = arith.constant dense<0xFF800000> : vector<8xf32>
    %95 = vector.multi_reduction <maximumf>, %94, %cst_69 [1] : vector<8x5xf32> to vector<8xf32>
    %96 = vector.shape_cast %95 : vector<8xf32> to vector<8x1xf32>
    %97 = vector.broadcast %96 : vector<8x1xf32> to vector<8x5xf32>
    %98 = arith.subf %94, %97 : vector<8x5xf32>
    %99 = math.exp %98 : vector<8x5xf32>
    %cst_70 = arith.constant dense<0.000000e+00> : vector<8xf32>
    %100 = vector.multi_reduction <add>, %99, %cst_70 [1] : vector<8x5xf32> to vector<8xf32>
    %101 = vector.shape_cast %100 : vector<8xf32> to vector<8x1xf32>
    %102 = tpu.reciprocal %101 {approx = true} : vector<8x1xf32> -> vector<8x1xf32>
    %103 = vector.broadcast %102 : vector<8x1xf32> to vector<8x5xf32>
    %104 = arith.mulf %99, %103 : vector<8x5xf32>
    %cst_71 = arith.constant 0.000000e+00 : f32
    %105 = vector.broadcast %cst_71 : f32 to vector<8x150xf32>
    %c2_72 = arith.constant 2 : index
    %c0_73 = arith.constant 0 : index
    %c0_74 = arith.constant 0 : index
    %c0_75 = arith.constant 0 : index
    %106 = vector.load %arg1[%c2_72, %c0_73, %c0_74, %c0_75] : memref<4x5x8x150xf32, #tpu.memory_space<vmem>>, vector<1x1x8x150xf32>
    %107 = vector.shape_cast %106 : vector<1x1x8x150xf32> to vector<8x150xf32>
    %108 = vector.extract_strided_slice %104 {offsets = [0, 0], sizes = [8, 1], strides = [1, 1]} : vector<8x5xf32> to vector<8x1xf32>
    %109 = vector.broadcast %108 : vector<8x1xf32> to vector<8x150xf32>
    %110 = arith.mulf %109, %107 : vector<8x150xf32>
    %111 = arith.addf %105, %110 : vector<8x150xf32>
    %c2_76 = arith.constant 2 : index
    %c1_77 = arith.constant 1 : index
    %c0_78 = arith.constant 0 : index
    %c0_79 = arith.constant 0 : index
    %112 = vector.load %arg1[%c2_76, %c1_77, %c0_78, %c0_79] : memref<4x5x8x150xf32, #tpu.memory_space<vmem>>, vector<1x1x8x150xf32>
    %113 = vector.shape_cast %112 : vector<1x1x8x150xf32> to vector<8x150xf32>
    %114 = vector.extract_strided_slice %104 {offsets = [0, 1], sizes = [8, 1], strides = [1, 1]} : vector<8x5xf32> to vector<8x1xf32>
    %115 = vector.broadcast %114 : vector<8x1xf32> to vector<8x150xf32>
    %116 = arith.mulf %115, %113 : vector<8x150xf32>
    %117 = arith.addf %111, %116 : vector<8x150xf32>
    %c2_80 = arith.constant 2 : index
    %c2_81 = arith.constant 2 : index
    %c0_82 = arith.constant 0 : index
    %c0_83 = arith.constant 0 : index
    %118 = vector.load %arg1[%c2_80, %c2_81, %c0_82, %c0_83] : memref<4x5x8x150xf32, #tpu.memory_space<vmem>>, vector<1x1x8x150xf32>
    %119 = vector.shape_cast %118 : vector<1x1x8x150xf32> to vector<8x150xf32>
    %120 = vector.extract_strided_slice %104 {offsets = [0, 2], sizes = [8, 1], strides = [1, 1]} : vector<8x5xf32> to vector<8x1xf32>
    %121 = vector.broadcast %120 : vector<8x1xf32> to vector<8x150xf32>
    %122 = arith.mulf %121, %119 : vector<8x150xf32>
    %123 = arith.addf %117, %122 : vector<8x150xf32>
    %c2_84 = arith.constant 2 : index
    %c3_85 = arith.constant 3 : index
    %c0_86 = arith.constant 0 : index
    %c0_87 = arith.constant 0 : index
    %124 = vector.load %arg1[%c2_84, %c3_85, %c0_86, %c0_87] : memref<4x5x8x150xf32, #tpu.memory_space<vmem>>, vector<1x1x8x150xf32>
    %125 = vector.shape_cast %124 : vector<1x1x8x150xf32> to vector<8x150xf32>
    %126 = vector.extract_strided_slice %104 {offsets = [0, 3], sizes = [8, 1], strides = [1, 1]} : vector<8x5xf32> to vector<8x1xf32>
    %127 = vector.broadcast %126 : vector<8x1xf32> to vector<8x150xf32>
    %128 = arith.mulf %127, %125 : vector<8x150xf32>
    %129 = arith.addf %123, %128 : vector<8x150xf32>
    %c2_88 = arith.constant 2 : index
    %c4_89 = arith.constant 4 : index
    %c0_90 = arith.constant 0 : index
    %c0_91 = arith.constant 0 : index
    %130 = vector.load %arg1[%c2_88, %c4_89, %c0_90, %c0_91] : memref<4x5x8x150xf32, #tpu.memory_space<vmem>>, vector<1x1x8x150xf32>
    %131 = vector.shape_cast %130 : vector<1x1x8x150xf32> to vector<8x150xf32>
    %132 = vector.extract_strided_slice %104 {offsets = [0, 4], sizes = [8, 1], strides = [1, 1]} : vector<8x5xf32> to vector<8x1xf32>
    %133 = vector.broadcast %132 : vector<8x1xf32> to vector<8x150xf32>
    %134 = arith.mulf %133, %131 : vector<8x150xf32>
    %135 = arith.addf %129, %134 : vector<8x150xf32>
    %136 = arith.addf %135, %68 : vector<8x150xf32>
    %c2_92 = arith.constant 2 : index
    %c0_93 = arith.constant 0 : index
    %c0_94 = arith.constant 0 : index
    %c0_95 = arith.constant 0 : index
    %137 = vector.load %arg1[%c2_92, %c0_93, %c0_94, %c0_95] : memref<4x5x8x150xf32, #tpu.memory_space<vmem>>, vector<1x1x8x150xf32>
    %138 = vector.shape_cast %137 : vector<1x1x8x150xf32> to vector<8x150xf32>
    %139 = arith.mulf %136, %138 : vector<8x150xf32>
    %cst_96 = arith.constant dense<0.000000e+00> : vector<8xf32>
    %140 = vector.multi_reduction <add>, %139, %cst_96 [1] : vector<8x150xf32> to vector<8xf32>
    %141 = vector.shape_cast %140 : vector<8xf32> to vector<8x1xf32>
    %c2_97 = arith.constant 2 : index
    %c1_98 = arith.constant 1 : index
    %c0_99 = arith.constant 0 : index
    %c0_100 = arith.constant 0 : index
    %142 = vector.load %arg1[%c2_97, %c1_98, %c0_99, %c0_100] : memref<4x5x8x150xf32, #tpu.memory_space<vmem>>, vector<1x1x8x150xf32>
    %143 = vector.shape_cast %142 : vector<1x1x8x150xf32> to vector<8x150xf32>
    %144 = arith.mulf %136, %143 : vector<8x150xf32>
    %cst_101 = arith.constant dense<0.000000e+00> : vector<8xf32>
    %145 = vector.multi_reduction <add>, %144, %cst_101 [1] : vector<8x150xf32> to vector<8xf32>
    %146 = vector.shape_cast %145 : vector<8xf32> to vector<8x1xf32>
    %c2_102 = arith.constant 2 : index
    %c2_103 = arith.constant 2 : index
    %c0_104 = arith.constant 0 : index
    %c0_105 = arith.constant 0 : index
    %147 = vector.load %arg1[%c2_102, %c2_103, %c0_104, %c0_105] : memref<4x5x8x150xf32, #tpu.memory_space<vmem>>, vector<1x1x8x150xf32>
    %148 = vector.shape_cast %147 : vector<1x1x8x150xf32> to vector<8x150xf32>
    %149 = arith.mulf %136, %148 : vector<8x150xf32>
    %cst_106 = arith.constant dense<0.000000e+00> : vector<8xf32>
    %150 = vector.multi_reduction <add>, %149, %cst_106 [1] : vector<8x150xf32> to vector<8xf32>
    %151 = vector.shape_cast %150 : vector<8xf32> to vector<8x1xf32>
    %c2_107 = arith.constant 2 : index
    %c3_108 = arith.constant 3 : index
    %c0_109 = arith.constant 0 : index
    %c0_110 = arith.constant 0 : index
    %152 = vector.load %arg1[%c2_107, %c3_108, %c0_109, %c0_110] : memref<4x5x8x150xf32, #tpu.memory_space<vmem>>, vector<1x1x8x150xf32>
    %153 = vector.shape_cast %152 : vector<1x1x8x150xf32> to vector<8x150xf32>
    %154 = arith.mulf %136, %153 : vector<8x150xf32>
    %cst_111 = arith.constant dense<0.000000e+00> : vector<8xf32>
    %155 = vector.multi_reduction <add>, %154, %cst_111 [1] : vector<8x150xf32> to vector<8xf32>
    %156 = vector.shape_cast %155 : vector<8xf32> to vector<8x1xf32>
    %c2_112 = arith.constant 2 : index
    %c4_113 = arith.constant 4 : index
    %c0_114 = arith.constant 0 : index
    %c0_115 = arith.constant 0 : index
    %157 = vector.load %arg1[%c2_112, %c4_113, %c0_114, %c0_115] : memref<4x5x8x150xf32, #tpu.memory_space<vmem>>, vector<1x1x8x150xf32>
    %158 = vector.shape_cast %157 : vector<1x1x8x150xf32> to vector<8x150xf32>
    %159 = arith.mulf %136, %158 : vector<8x150xf32>
    %cst_116 = arith.constant dense<0.000000e+00> : vector<8xf32>
    %160 = vector.multi_reduction <add>, %159, %cst_116 [1] : vector<8x150xf32> to vector<8xf32>
    %161 = vector.shape_cast %160 : vector<8xf32> to vector<8x1xf32>
    %162 = tpu.concatenate %141, %146, %151, %156, %161 in 1 : vector<8x1xf32>, vector<8x1xf32>, vector<8x1xf32>, vector<8x1xf32>, vector<8x1xf32> -> vector<8x5xf32>
    %cst_117 = arith.constant dense<0xFF800000> : vector<8xf32>
    %163 = vector.multi_reduction <maximumf>, %162, %cst_117 [1] : vector<8x5xf32> to vector<8xf32>
    %164 = vector.shape_cast %163 : vector<8xf32> to vector<8x1xf32>
    %165 = vector.broadcast %164 : vector<8x1xf32> to vector<8x5xf32>
    %166 = arith.subf %162, %165 : vector<8x5xf32>
    %167 = math.exp %166 : vector<8x5xf32>
    %cst_118 = arith.constant dense<0.000000e+00> : vector<8xf32>
    %168 = vector.multi_reduction <add>, %167, %cst_118 [1] : vector<8x5xf32> to vector<8xf32>
    %169 = vector.shape_cast %168 : vector<8xf32> to vector<8x1xf32>
    %170 = tpu.reciprocal %169 {approx = true} : vector<8x1xf32> -> vector<8x1xf32>
    %171 = vector.broadcast %170 : vector<8x1xf32> to vector<8x5xf32>
    %172 = arith.mulf %167, %171 : vector<8x5xf32>
    %cst_119 = arith.constant 0.000000e+00 : f32
    %173 = vector.broadcast %cst_119 : f32 to vector<8x150xf32>
    %c3_120 = arith.constant 3 : index
    %c0_121 = arith.constant 0 : index
    %c0_122 = arith.constant 0 : index
    %c0_123 = arith.constant 0 : index
    %174 = vector.load %arg1[%c3_120, %c0_121, %c0_122, %c0_123] : memref<4x5x8x150xf32, #tpu.memory_space<vmem>>, vector<1x1x8x150xf32>
    %175 = vector.shape_cast %174 : vector<1x1x8x150xf32> to vector<8x150xf32>
    %176 = vector.extract_strided_slice %172 {offsets = [0, 0], sizes = [8, 1], strides = [1, 1]} : vector<8x5xf32> to vector<8x1xf32>
    %177 = vector.broadcast %176 : vector<8x1xf32> to vector<8x150xf32>
    %178 = arith.mulf %177, %175 : vector<8x150xf32>
    %179 = arith.addf %173, %178 : vector<8x150xf32>
    %c3_124 = arith.constant 3 : index
    %c1_125 = arith.constant 1 : index
    %c0_126 = arith.constant 0 : index
    %c0_127 = arith.constant 0 : index
    %180 = vector.load %arg1[%c3_124, %c1_125, %c0_126, %c0_127] : memref<4x5x8x150xf32, #tpu.memory_space<vmem>>, vector<1x1x8x150xf32>
    %181 = vector.shape_cast %180 : vector<1x1x8x150xf32> to vector<8x150xf32>
    %182 = vector.extract_strided_slice %172 {offsets = [0, 1], sizes = [8, 1], strides = [1, 1]} : vector<8x5xf32> to vector<8x1xf32>
    %183 = vector.broadcast %182 : vector<8x1xf32> to vector<8x150xf32>
    %184 = arith.mulf %183, %181 : vector<8x150xf32>
    %185 = arith.addf %179, %184 : vector<8x150xf32>
    %c3_128 = arith.constant 3 : index
    %c2_129 = arith.constant 2 : index
    %c0_130 = arith.constant 0 : index
    %c0_131 = arith.constant 0 : index
    %186 = vector.load %arg1[%c3_128, %c2_129, %c0_130, %c0_131] : memref<4x5x8x150xf32, #tpu.memory_space<vmem>>, vector<1x1x8x150xf32>
    %187 = vector.shape_cast %186 : vector<1x1x8x150xf32> to vector<8x150xf32>
    %188 = vector.extract_strided_slice %172 {offsets = [0, 2], sizes = [8, 1], strides = [1, 1]} : vector<8x5xf32> to vector<8x1xf32>
    %189 = vector.broadcast %188 : vector<8x1xf32> to vector<8x150xf32>
    %190 = arith.mulf %189, %187 : vector<8x150xf32>
    %191 = arith.addf %185, %190 : vector<8x150xf32>
    %c3_132 = arith.constant 3 : index
    %c3_133 = arith.constant 3 : index
    %c0_134 = arith.constant 0 : index
    %c0_135 = arith.constant 0 : index
    %192 = vector.load %arg1[%c3_132, %c3_133, %c0_134, %c0_135] : memref<4x5x8x150xf32, #tpu.memory_space<vmem>>, vector<1x1x8x150xf32>
    %193 = vector.shape_cast %192 : vector<1x1x8x150xf32> to vector<8x150xf32>
    %194 = vector.extract_strided_slice %172 {offsets = [0, 3], sizes = [8, 1], strides = [1, 1]} : vector<8x5xf32> to vector<8x1xf32>
    %195 = vector.broadcast %194 : vector<8x1xf32> to vector<8x150xf32>
    %196 = arith.mulf %195, %193 : vector<8x150xf32>
    %197 = arith.addf %191, %196 : vector<8x150xf32>
    %c3_136 = arith.constant 3 : index
    %c4_137 = arith.constant 4 : index
    %c0_138 = arith.constant 0 : index
    %c0_139 = arith.constant 0 : index
    %198 = vector.load %arg1[%c3_136, %c4_137, %c0_138, %c0_139] : memref<4x5x8x150xf32, #tpu.memory_space<vmem>>, vector<1x1x8x150xf32>
    %199 = vector.shape_cast %198 : vector<1x1x8x150xf32> to vector<8x150xf32>
    %200 = vector.extract_strided_slice %172 {offsets = [0, 4], sizes = [8, 1], strides = [1, 1]} : vector<8x5xf32> to vector<8x1xf32>
    %201 = vector.broadcast %200 : vector<8x1xf32> to vector<8x150xf32>
    %202 = arith.mulf %201, %199 : vector<8x150xf32>
    %203 = arith.addf %197, %202 : vector<8x150xf32>
    %204 = arith.addf %203, %136 : vector<8x150xf32>
    %c0_140 = arith.constant 0 : index
    %c0_141 = arith.constant 0 : index
    %205 = vector.load %arg3[%c0_140, %c0_141] : memref<150x128xf32, #tpu.memory_space<vmem>>, vector<150x128xf32>
    %cst_142 = arith.constant dense<0.000000e+00> : vector<8x128xf32>
    %206 = tpu.matmul %204, %205, %cst_142 {dimension_numbers = #tpu.dot_dimension_numbers<[1], [0], [0], [1], [0, 0, 1, 1], [], []>} : vector<8x150xf32>, vector<150x128xf32>, vector<8x128xf32> -> vector<8x128xf32>
    %207 = tpu.iota {dimensions = array<i32: 1>} : vector<8x128xi32>
    %c32_i32 = arith.constant 32 : i32
    %208 = vector.broadcast %c32_i32 : i32 to vector<8x128xi32>
    %209 = arith.cmpi slt, %207, %208 : vector<8x128xi32>
    %cst_143 = arith.constant -1.000000e+30 : f32
    %210 = vector.broadcast %cst_143 : f32 to vector<8x128xf32>
    %211 = arith.select %209, %206, %210 : vector<8x128xi1>, vector<8x128xf32>
    %cst_144 = arith.constant dense<0xFF800000> : vector<8xf32>
    %212 = vector.multi_reduction <maximumf>, %211, %cst_144 [1] : vector<8x128xf32> to vector<8xf32>
    %213 = vector.shape_cast %212 : vector<8xf32> to vector<8x1xf32>
    %214 = vector.broadcast %213 : vector<8x1xf32> to vector<8x128xf32>
    %215 = arith.subf %211, %214 : vector<8x128xf32>
    %216 = math.exp %215 : vector<8x128xf32>
    %cst_145 = arith.constant dense<0.000000e+00> : vector<8xf32>
    %217 = vector.multi_reduction <add>, %216, %cst_145 [1] : vector<8x128xf32> to vector<8xf32>
    %218 = vector.shape_cast %217 : vector<8xf32> to vector<8x1xf32>
    %219 = tpu.reciprocal %218 {approx = true} : vector<8x1xf32> -> vector<8x1xf32>
    %220 = vector.broadcast %219 : vector<8x1xf32> to vector<8x128xf32>
    %221 = arith.mulf %216, %220 : vector<8x128xf32>
    %c0_146 = arith.constant 0 : index
    %c0_147 = arith.constant 0 : index
    %222 = vector.load %arg4[%c0_146, %c0_147] : memref<8x128xf32, #tpu.memory_space<vmem>>, vector<8x128xf32>
    tpu.vector_store %arg4[%c0_146, %c0_147], %221 {strides = array<i32>} : memref<8x128xf32, #tpu.memory_space<vmem>>, vector<8x128xf32>,
    return
  }
  func.func @transform_0(%arg0: i32) -> (i32, i32, i32, i32) {
    %c0_i32 = arith.constant 0 : i32
    %c0_i32_0 = arith.constant 0 : i32
    %c0_i32_1 = arith.constant 0 : i32
    %c0_i32_2 = arith.constant 0 : i32
    return %c0_i32, %c0_i32_0, %arg0, %c0_i32_1 : i32, i32, i32, i32
  }
  func.func @transform_1(%arg0: i32) -> (i32, i32) {
    %c0_i32 = arith.constant 0 : i32
    %c0_i32_0 = arith.constant 0 : i32
    return %arg0, %c0_i32 : i32, i32
  }
  func.func @transform_2(%arg0: i32) -> (i32, i32) {
    %c0_i32 = arith.constant 0 : i32
    %c0_i32_0 = arith.constant 0 : i32
    %c0_i32_1 = arith.constant 0 : i32
    return %c0_i32, %c0_i32_0 : i32, i32
  }
  func.func @transform_3(%arg0: i32) -> (i32, i32) {
    %c0_i32 = arith.constant 0 : i32
    %c0_i32_0 = arith.constant 0 : i32
    return %arg0, %c0_i32 : i32, i32
  }
}

</mosaic_0001>

<llo_original>
// kernel: tpu_custom_call.1
$region0: #{tpu_custom_call.1}
  #allocation0 [shape = 'u32[]', space=smem, size = 0x4, offset = 0x4, fixed_abs, tag = 'smem constant byte address 0x4 - core index']
  #allocation1 [shape = 'u32[144,128]{1,0:T(1,128)}', space=vmem, size = 0x12000, scoped, tag = 'internal scratch']
  %s0 = inlined_call_operand.hbm [shape: f32[4,5,8,150], index: 0, kind: input, shape index: {}]
  %s1 = inlined_call_operand.hbm [shape: f32[8,150], index: 1, kind: input, shape index: {}]
  %s2 = inlined_call_operand.hbm [shape: f32[150,128], index: 2, kind: input, shape index: {}]
  %s3 = inlined_call_operand.hbm [shape: f32[8,128], index: 3, kind: output, shape index: {}]
  %s4 = sld [smem:[#allocation0]]
  $region34: #{tpu_custom_call.1} parent=0
    _
  %s6 = ssub.s32 1, %s4
  %s7 = scalar_select 0, %s6, %s4
  $region1: #{tpu_custom_call.1} parent=0
    #allocation2 [shape = 'u8[163840]{0}', space=vmem, size = 0x28000, scoped, tag = 'input window, operand 0, single buffered']
    #allocation3 [shape = 's32[1]{0}', space=sflag, size = 0x4, scoped, tag = 'scoped memory for tpu_custom_call.1']
    #allocation4 [shape = 's32[1]{0}', space=sflag, size = 0x4, scoped, tag = 'scoped memory for tpu_custom_call.1']
    #allocation5 [shape = 'u8[8192]{0}', space=vmem, size = 0x2000, scoped, tag = 'input window, operand 1, single buffered']
    #allocation6 [shape = 's32[1]{0}', space=sflag, size = 0x4, scoped, tag = 'scoped memory for tpu_custom_call.1']
    #allocation7 [shape = 'u8[77824]{0}', space=vmem, size = 0x13000, scoped, tag = 'input window, operand 2, single buffered']
    #allocation8 [shape = 'u8[4096]{0}', space=vmem, size = 0x1000, scoped, tag = 'output window, operand 0, single buffered']
    %8 = vsyncpa [#allocation3], 0
    %9 = vsyncpa [#allocation6], 0
    %10 = vsyncpa [#allocation4], 0
    // Predicated region
    $region2: #{tpu_custom_call.1} parent=1 // pred_check
      _
    $region3: #{tpu_custom_call.1} parent=1 // pred_check_branch
      %12 = sbr.rel (0) target = $region5
    $region4: #{tpu_custom_call.1} parent=1 // pred_region
      %s14 = ssub.s32 5120, 5120
      %15 = vsyncadd [#allocation3], %s14
      %s16 = sshll.u32 [#allocation2], 4
      %s17 = int_to_ptr.vmem [resolvable:$true] %s16
      %22 = dma.hbm_to_vmem [thread:$0]  %s0, 5120, %s17, [#allocation3], 256, 256, 16
    $region5: #{tpu_custom_call.1} parent=1 // pred_fallthru
      _
    // Predicated region
    $region6: #{tpu_custom_call.1} parent=1 // pred_check
      _
    $region7: #{tpu_custom_call.1} parent=1 // pred_check_branch
      %24 = sbr.rel (0) target = $region9
    $region8: #{tpu_custom_call.1} parent=1 // pred_region
      %s26 = ssub.s32 256, 256
      %27 = vsyncadd [#allocation6], %s26
      %s29 = sshll.u32 [#allocation5], 4
      %s30 = int_to_ptr.vmem [resolvable:$true] %s29
      %32 = dma.hbm_to_vmem [thread:$0]  %s1, 256, %s30, [#allocation6]
    $region9: #{tpu_custom_call.1} parent=1 // pred_fallthru
      _
    // Predicated region
    $region10: #{tpu_custom_call.1} parent=1 // pred_check
      _
    $region11: #{tpu_custom_call.1} parent=1 // pred_check_branch
      %34 = sbr.rel (0) target = $region13
    $region12: #{tpu_custom_call.1} parent=1 // pred_region
      %s36 = ssub.s32 2432, 2432
      %37 = vsyncadd [#allocation6], %s36
      %s38 = sshll.u32 [#allocation7], 4
      %s39 = int_to_ptr.vmem [resolvable:$true] %s38
      %44 = dma.hbm_to_vmem [thread:$0]  %s2, 2432, %s39, [#allocation6], 128, 128, 8
    $region13: #{tpu_custom_call.1} parent=1 // pred_fallthru
      _
    // Predicated region
    $region14: #{tpu_custom_call.1} parent=1 // pred_check
      _
    $region15: #{tpu_custom_call.1} parent=1 // pred_check_branch
      %46 = sbr.rel (0) target = $region17
    $region16: #{tpu_custom_call.1} parent=1 // pred_region
      %47 = dma.done [#allocation3], 5120
    $region17: #{tpu_custom_call.1} parent=1 // pred_fallthru
      _
    // Predicated region
    $region18: #{tpu_custom_call.1} parent=1 // pred_check
      _
    $region19: #{tpu_custom_call.1} parent=1 // pred_check_branch
      %49 = sbr.rel (0) target = $region21
    $region20: #{tpu_custom_call.1} parent=1 // pred_region
      %50 = dma.done [#allocation6], 256
    $region21: #{tpu_custom_call.1} parent=1 // pred_fallthru
      _
    // Predicated region
    $region22: #{tpu_custom_call.1} parent=1 // pred_check
      _
    $region23: #{tpu_custom_call.1} parent=1 // pred_check_branch
      %52 = sbr.rel (0) target = $region25
    $region24: #{tpu_custom_call.1} parent=1 // pred_region
      %53 = dma.done [#allocation6], 2432
    $region25: #{tpu_custom_call.1} parent=1 // pred_fallthru
      _
    %v54 = vld [vmem:[#allocation5] sm:$0xff]
    %v55 = vld [vmem:[#allocation5 + $0x8] sm:$0xff]
    %v56 = vld [vmem:[#allocation2] sm:$0xff]
    %v57 = vld [vmem:[#allocation2 + $0x8] sm:$0xff]
    %v58 = vmul.f32 %v54, %v56
    %v59 = vmul.f32 %v55, %v57
    %vm60 = vcmask 179200
    %v61 = vsel %vm60, %v59, 0.0
    %v62 = vadd.f32 %v58, %v61
    %63 = vadd.xlane.f32.xlu0 %v62
    %v64 = vpop.xlane.xlu0 %63
    %s65 = scalar_lea.vmem [#allocation2], 16
    %v66 = vld [vmem:[%s65] sm:$0xff]
    %v67 = vld [vmem:[%s65 + $0x8] sm:$0xff]
    %v68 = vmul.f32 %v54, %v66
    %v69 = vmul.f32 %v55, %v67
    %v70 = vsel %vm60, %v69, 0.0
    %v71 = vadd.f32 %v68, %v70
    %72 = vadd.xlane.f32.xlu0 %v71
    %v73 = vpop.xlane.xlu0 %72
    %s74 = scalar_lea.vmem [#allocation2], 32
    %v75 = vld [vmem:[%s74] sm:$0xff]
    %v76 = vld [vmem:[%s74 + $0x8] sm:$0xff]
    %v77 = vmul.f32 %v54, %v75
    %v78 = vmul.f32 %v55, %v76
    %v79 = vsel %vm60, %v78, 0.0
    %v80 = vadd.f32 %v77, %v79
    %81 = vadd.xlane.f32.xlu0 %v80
    %v82 = vpop.xlane.xlu0 %81
    %s83 = scalar_lea.vmem [#allocation2], 48
    %v84 = vld [vmem:[%s83] sm:$0xff]
    %v85 = vld [vmem:[%s83 + $0x8] sm:$0xff]
    %v86 = vmul.f32 %v54, %v84
    %v87 = vmul.f32 %v55, %v85
    %v88 = vsel %vm60, %v87, 0.0
    %v89 = vadd.f32 %v86, %v88
    %90 = vadd.xlane.f32.xlu0 %v89
    %v91 = vpop.xlane.xlu0 %90
    %s92 = scalar_lea.vmem [#allocation2], 64
    %v93 = vld [vmem:[%s92] sm:$0xff]
    %v94 = vld [vmem:[%s92 + $0x8] sm:$0xff]
    %v95 = vmul.f32 %v54, %v93
    %v96 = vmul.f32 %v55, %v94
    %v97 = vsel %vm60, %v96, 0.0
    %v98 = vadd.f32 %v95, %v97
    %99 = vadd.xlane.f32.xlu0 %v98
    %v100 = vpop.xlane.xlu0 %99
    %vm101 = vcmask 7168
    %v102 = vsel %vm101, %v64, %v73
    %vm103 = vcmask 15360
    %v104 = vsel %vm103, %v102, %v82
    %vm105 = vcmask 23552
    %v106 = vsel %vm105, %v104, %v91
    %vm107 = vcmask 31744
    %v108 = vsel %vm107, %v106, %v100
    %vm109 = vcmask 39936
    %v110 = vsel %vm109, %v108, -inf
    %111 = vmax.xlane.f32.xlu0 %v110
    %v112 = vpop.xlane.xlu0 %111
    %v113 = vsub.f32 %v108, %v112
    %v114 = vmul.f32 %v113, 1.442695
    %v115 = vpow.pop %v114
    %v116 = vsel %vm109, %v115, 0.0
    %117 = vadd.xlane.f32.xlu0 %v116
    %v118 = vpop.xlane.xlu0 %117
    %v119 = vrcp.pop %v118
    %v120 = vmul.f32 %v115, %v119
    %s121 = scalar_lea.vmem [#allocation2], 80
    %v122 = vld [vmem:[%s121] sm:$0xff]
    %v123 = vld [vmem:[%s121 + $0x8] sm:$0xff]
    %125 = vset.pattern.permute.xlu0 0
    %126 = vperm.xlu0 %125, %v120
    %v127 = vpop.permute.xlu0 %126
    %v129 = vmul.f32 %v127, %v122
    %v130 = vmul.f32 %v127, %v123
    %v131 = vadd.f32 %v129, 0.0
    %v132 = vadd.f32 %v130, 0.0
    %s133 = scalar_lea.vmem [#allocation2], 96
    %v134 = vld [vmem:[%s133] sm:$0xff]
    %v135 = vld [vmem:[%s133 + $0x8] sm:$0xff]
    %136 = vset.pattern.permute.xlu0 1
    %137 = vperm.xlu0 %136, %v120
    %v138 = vpop.permute.xlu0 %137
    %v140 = vmul.f32 %v138, %v134
    %v141 = vmul.f32 %v138, %v135
    %v142 = vadd.f32 %v131, %v140
    %v143 = vadd.f32 %v132, %v141
    %s144 = scalar_lea.vmem [#allocation2], 112
    %v145 = vld [vmem:[%s144] sm:$0xff]
    %v146 = vld [vmem:[%s144 + $0x8] sm:$0xff]
    %147 = vset.pattern.permute.xlu0 2
    %148 = vperm.xlu0 %147, %v120
    %v149 = vpop.permute.xlu0 %148
    %v151 = vmul.f32 %v149, %v145
    %v152 = vmul.f32 %v149, %v146
    %v153 = vadd.f32 %v142, %v151
    %v154 = vadd.f32 %v143, %v152
    %s155 = scalar_lea.vmem [#allocation2], 128
    %v156 = vld [vmem:[%s155] sm:$0xff]
    %v157 = vld [vmem:[%s155 + $0x8] sm:$0xff]
    %158 = vset.pattern.permute.xlu0 3
    %159 = vperm.xlu0 %158, %v120
    %v160 = vpop.permute.xlu0 %159
    %v162 = vmul.f32 %v160, %v156
    %v163 = vmul.f32 %v160, %v157
    %v164 = vadd.f32 %v153, %v162
    %v165 = vadd.f32 %v154, %v163
    %s166 = scalar_lea.vmem [#allocation2], 144
    %v167 = vld [vmem:[%s166] sm:$0xff]
    %v168 = vld [vmem:[%s166 + $0x8] sm:$0xff]
    %169 = vset.pattern.permute.xlu0 4
    %170 = vperm.xlu0 %169, %v120
    %v171 = vpop.permute.xlu0 %170
    %v173 = vmul.f32 %v171, %v167
    %v174 = vmul.f32 %v171, %v168
    %v175 = vadd.f32 %v164, %v173
    %v176 = vadd.f32 %v165, %v174
    %v177 = vadd.f32 %v175, %v54
    %v178 = vadd.f32 %v176, %v55
    %v179 = vmul.f32 %v177, %v122
    %v180 = vmul.f32 %v178, %v123
    %v181 = vsel %vm60, %v180, 0.0
    %v182 = vadd.f32 %v179, %v181
    %183 = vadd.xlane.f32.xlu0 %v182
    %v184 = vpop.xlane.xlu0 %183
    %v185 = vmul.f32 %v177, %v134
    %v186 = vmul.f32 %v178, %v135
    %v187 = vsel %vm60, %v186, 0.0
    %v188 = vadd.f32 %v185, %v187
    %189 = vadd.xlane.f32.xlu0 %v188
    %v190 = vpop.xlane.xlu0 %189
    %v191 = vmul.f32 %v177, %v145
    %v192 = vmul.f32 %v178, %v146
    %v193 = vsel %vm60, %v192, 0.0
    %v194 = vadd.f32 %v191, %v193
    %195 = vadd.xlane.f32.xlu0 %v194
    %v196 = vpop.xlane.xlu0 %195
    %v197 = vmul.f32 %v177, %v156
    %v198 = vmul.f32 %v178, %v157
    %v199 = vsel %vm60, %v198, 0.0
    %v200 = vadd.f32 %v197, %v199
    %201 = vadd.xlane.f32.xlu0 %v200
    %v202 = vpop.xlane.xlu0 %201
    %v203 = vmul.f32 %v177, %v167
    %v204 = vmul.f32 %v178, %v168
    %v205 = vsel %vm60, %v204, 0.0
    %v206 = vadd.f32 %v203, %v205
    %207 = vadd.xlane.f32.xlu0 %v206
    %v208 = vpop.xlane.xlu0 %207
    %v209 = vsel %vm101, %v184, %v190
    %v210 = vsel %vm103, %v209, %v196
    %v211 = vsel %vm105, %v210, %v202
    %v212 = vsel %vm107, %v211, %v208
    %v213 = vsel %vm109, %v212, -inf
    %214 = vmax.xlane.f32.xlu0 %v213
    %v215 = vpop.xlane.xlu0 %214
    %v216 = vsub.f32 %v212, %v215
    %v217 = vmul.f32 %v216, 1.442695
    %v218 = vpow.pop %v217
    %v219 = vsel %vm109, %v218, 0.0
    %220 = vadd.xlane.f32.xlu0 %v219
    %v221 = vpop.xlane.xlu0 %220
    %v222 = vrcp.pop %v221
    %v223 = vmul.f32 %v218, %v222
    %s224 = scalar_lea.vmem [#allocation2], 160
    %v225 = vld [vmem:[%s224] sm:$0xff]
    %v226 = vld [vmem:[%s224 + $0x8] sm:$0xff]
    %228 = vset.pattern.permute.xlu0 0
    %229 = vperm.xlu0 %228, %v223
    %v230 = vpop.permute.xlu0 %229
    %v232 = vmul.f32 %v230, %v225
    %v233 = vmul.f32 %v230, %v226
    %v234 = vadd.f32 %v232, 0.0
    %v235 = vadd.f32 %v233, 0.0
    %s236 = scalar_lea.vmem [#allocation2], 176
    %v237 = vld [vmem:[%s236] sm:$0xff]
    %v238 = vld [vmem:[%s236 + $0x8] sm:$0xff]
    %239 = vset.pattern.permute.xlu0 1
    %240 = vperm.xlu0 %239, %v223
    %v241 = vpop.permute.xlu0 %240
    %v243 = vmul.f32 %v241, %v237
    %v244 = vmul.f32 %v241, %v238
    %v245 = vadd.f32 %v234, %v243
    %v246 = vadd.f32 %v235, %v244
    %s247 = scalar_lea.vmem [#allocation2], 192
    %v248 = vld [vmem:[%s247] sm:$0xff]
    %v249 = vld [vmem:[%s247 + $0x8] sm:$0xff]
    %250 = vset.pattern.permute.xlu0 2
    %251 = vperm.xlu0 %250, %v223
    %v252 = vpop.permute.xlu0 %251
    %v254 = vmul.f32 %v252, %v248
    %v255 = vmul.f32 %v252, %v249
    %v256 = vadd.f32 %v245, %v254
    %v257 = vadd.f32 %v246, %v255
    %s258 = scalar_lea.vmem [#allocation2], 208
    %v259 = vld [vmem:[%s258] sm:$0xff]
    %v260 = vld [vmem:[%s258 + $0x8] sm:$0xff]
    %261 = vset.pattern.permute.xlu0 3
    %262 = vperm.xlu0 %261, %v223
    %v263 = vpop.permute.xlu0 %262
    %v265 = vmul.f32 %v263, %v259
    %v266 = vmul.f32 %v263, %v260
    %v267 = vadd.f32 %v256, %v265
    %v268 = vadd.f32 %v257, %v266
    %s269 = scalar_lea.vmem [#allocation2], 224
    %v270 = vld [vmem:[%s269] sm:$0xff]
    %v271 = vld [vmem:[%s269 + $0x8] sm:$0xff]
    %272 = vset.pattern.permute.xlu0 4
    %273 = vperm.xlu0 %272, %v223
    %v274 = vpop.permute.xlu0 %273
    %v276 = vmul.f32 %v274, %v270
    %v277 = vmul.f32 %v274, %v271
    %v278 = vadd.f32 %v267, %v276
    %v279 = vadd.f32 %v268, %v277
    %v280 = vadd.f32 %v278, %v177
    %v281 = vadd.f32 %v279, %v178
    %v282 = vmul.f32 %v280, %v225
    %v283 = vmul.f32 %v281, %v226
    %v284 = vsel %vm60, %v283, 0.0
    %v285 = vadd.f32 %v282, %v284
    %286 = vadd.xlane.f32.xlu0 %v285
    %v287 = vpop.xlane.xlu0 %286
    %v288 = vmul.f32 %v280, %v237
    %v289 = vmul.f32 %v281, %v238
    %v290 = vsel %vm60, %v289, 0.0
    %v291 = vadd.f32 %v288, %v290
    %292 = vadd.xlane.f32.xlu0 %v291
    %v293 = vpop.xlane.xlu0 %292
    %v294 = vmul.f32 %v280, %v248
    %v295 = vmul.f32 %v281, %v249
    %v296 = vsel %vm60, %v295, 0.0
    %v297 = vadd.f32 %v294, %v296
    %298 = vadd.xlane.f32.xlu0 %v297
    %v299 = vpop.xlane.xlu0 %298
    %v300 = vmul.f32 %v280, %v259
    %v301 = vmul.f32 %v281, %v260
    %v302 = vsel %vm60, %v301, 0.0
    %v303 = vadd.f32 %v300, %v302
    %304 = vadd.xlane.f32.xlu0 %v303
    %v305 = vpop.xlane.xlu0 %304
    %v306 = vmul.f32 %v280, %v270
    %v307 = vmul.f32 %v281, %v271
    %v308 = vsel %vm60, %v307, 0.0
    %v309 = vadd.f32 %v306, %v308
    %310 = vadd.xlane.f32.xlu0 %v309
    %v311 = vpop.xlane.xlu0 %310
    %v312 = vsel %vm101, %v287, %v293
    %v313 = vsel %vm103, %v312, %v299
    %v314 = vsel %vm105, %v313, %v305
    %v315 = vsel %vm107, %v314, %v311
    %v316 = vsel %vm109, %v315, -inf
    %317 = vmax.xlane.f32.xlu0 %v316
    %v318 = vpop.xlane.xlu0 %317
    %v319 = vsub.f32 %v315, %v318
    %v320 = vmul.f32 %v319, 1.442695
    %v321 = vpow.pop %v320
    %v322 = vsel %vm109, %v321, 0.0
    %323 = vadd.xlane.f32.xlu0 %v322
    %v324 = vpop.xlane.xlu0 %323
    %v325 = vrcp.pop %v324
    %v326 = vmul.f32 %v321, %v325
    %s327 = scalar_lea.vmem [#allocation2], 240
    %v328 = vld [vmem:[%s327] sm:$0xff]
    %v329 = vld [vmem:[%s327 + $0x8] sm:$0xff]
    %331 = vset.pattern.permute.xlu0 0
    %332 = vperm.xlu0 %331, %v326
    %v333 = vpop.permute.xlu0 %332
    %v335 = vmul.f32 %v333, %v328
    %v336 = vmul.f32 %v333, %v329
    %v337 = vadd.f32 %v335, 0.0
    %v338 = vadd.f32 %v336, 0.0
    %s339 = scalar_lea.vmem [#allocation2], 256
    %v340 = vld [vmem:[%s339] sm:$0xff]
    %v341 = vld [vmem:[%s339 + $0x8] sm:$0xff]
    %342 = vset.pattern.permute.xlu0 1
    %343 = vperm.xlu0 %342, %v326
    %v344 = vpop.permute.xlu0 %343
    %v346 = vmul.f32 %v344, %v340
    %v347 = vmul.f32 %v344, %v341
    %v348 = vadd.f32 %v337, %v346
    %v349 = vadd.f32 %v338, %v347
    %s350 = scalar_lea.vmem [#allocation2], 272
    %v351 = vld [vmem:[%s350] sm:$0xff]
    %v352 = vld [vmem:[%s350 + $0x8] sm:$0xff]
    %353 = vset.pattern.permute.xlu0 2
    %354 = vperm.xlu0 %353, %v326
    %v355 = vpop.permute.xlu0 %354
    %v357 = vmul.f32 %v355, %v351
    %v358 = vmul.f32 %v355, %v352
    %v359 = vadd.f32 %v348, %v357
    %v360 = vadd.f32 %v349, %v358
    %s361 = scalar_lea.vmem [#allocation2], 288
    %v362 = vld [vmem:[%s361] sm:$0xff]
    %v363 = vld [vmem:[%s361 + $0x8] sm:$0xff]
    %364 = vset.pattern.permute.xlu0 3
    %365 = vperm.xlu0 %364, %v326
    %v366 = vpop.permute.xlu0 %365
    %v368 = vmul.f32 %v366, %v362
    %v369 = vmul.f32 %v366, %v363
    %v370 = vadd.f32 %v359, %v368
    %v371 = vadd.f32 %v360, %v369
    %s372 = scalar_lea.vmem [#allocation2], 304
    %v373 = vld [vmem:[%s372] sm:$0xff]
    %v374 = vld [vmem:[%s372 + $0x8] sm:$0xff]
    %375 = vset.pattern.permute.xlu0 4
    %376 = vperm.xlu0 %375, %v326
    %v377 = vpop.permute.xlu0 %376
    %v379 = vmul.f32 %v377, %v373
    %v380 = vmul.f32 %v377, %v374
    %v381 = vadd.f32 %v370, %v379
    %v382 = vadd.f32 %v371, %v380
    %v383 = vadd.f32 %v381, %v280
    %v384 = vadd.f32 %v382, %v281
    %v385 = vld [vmem:[#allocation7] sm:$0xff]
    %v386 = vld [vmem:[#allocation7 + $0x8] sm:$0xff]
    %v387 = vld [vmem:[#allocation7 + $0x10] sm:$0xff]
    %v388 = vld [vmem:[#allocation7 + $0x18] sm:$0xff]
    %v389 = vld [vmem:[#allocation7 + $0x20] sm:$0xff]
    %v390 = vld [vmem:[#allocation7 + $0x28] sm:$0xff]
    %v391 = vld [vmem:[#allocation7 + $0x30] sm:$0xff]
    %v392 = vld [vmem:[#allocation7 + $0x38] sm:$0xff]
    %v393 = vld [vmem:[#allocation7 + $0x40] sm:$0xff]
    %v394 = vld [vmem:[#allocation7 + $0x48] sm:$0xff]
    %v395 = vld [vmem:[#allocation7 + $0x50] sm:$0xff]
    %v396 = vld [vmem:[#allocation7 + $0x58] sm:$0xff]
    %v397 = vld [vmem:[#allocation7 + $0x60] sm:$0xff]
    %v398 = vld [vmem:[#allocation7 + $0x68] sm:$0xff]
    %v399 = vld [vmem:[#allocation7 + $0x70] sm:$0xff]
    %v400 = vld [vmem:[#allocation7 + $0x78] sm:$0xff]
    %v401 = vld [vmem:[#allocation7 + $0x80] sm:$0xff]
    %v402 = vld [vmem:[#allocation7 + $0x88] sm:$0xff]
    %v403 = vld [vmem:[#allocation7 + $0x90] sm:$0x3f]
    %v405 = vsel %vm60, %v384, 0
    %vm407 = vcmask 1045504
    %v409 = vsel %vm407, %v403, 0
    %411 = vmatprep.subr.mxu0 0.0
    %412 = vmatpush1.msra.mxu0 %v385
    %413 = vmatprep.subr.mxu0 0.0
    %414 = vmatpush1.msra.mxu0 %v386
    %415 = vmatprep.subr.mxu0 0.0
    %416 = vmatpush1.msra.mxu0 %v387
    %417 = vmatprep.subr.mxu0 0.0
    %418 = vmatpush1.msra.mxu0 %v388
    %419 = vmatprep.subr.mxu0 0.0
    %420 = vmatpush1.msra.mxu0 %v389
    %421 = vmatprep.subr.mxu0 0.0
    %422 = vmatpush1.msra.mxu0 %v390
    %423 = vmatprep.subr.mxu0 0.0
    %424 = vmatpush1.msra.mxu0 %v391
    %425 = vmatprep.subr.mxu0 0.0
    %426 = vmatpush1.msra.mxu0 %v392
    %427 = vmatprep.subr.mxu0 0.0
    %428 = vmatpush1.msra.mxu0 %v393
    %429 = vmatprep.subr.mxu0 0.0
    %430 = vmatpush1.msra.mxu0 %v394
    %431 = vmatprep.subr.mxu0 0.0
    %432 = vmatpush1.msra.mxu0 %v395
    %433 = vmatprep.subr.mxu0 0.0
    %434 = vmatpush1.msra.mxu0 %v396
    %435 = vmatprep.subr.mxu0 0.0
    %436 = vmatpush1.msra.mxu0 %v397
    %437 = vmatprep.subr.mxu0 0.0
    %438 = vmatpush1.msra.mxu0 %v398
    %439 = vmatprep.subr.mxu0 0.0
    %440 = vmatpush1.msra.mxu0 %v399
    %441 = vmatprep.subr.mxu0 0.0
    %442 = vmatpush1.msra.mxu0 %v400
    %443 = vmatprep.subr.mxu0 0.0
    %444 = vmatpush1.msra.mxu0 %v401
    %445 = vmatprep.subr.mxu0 0.0
    %446 = vmatpush1.msra.mxu0 %v402
    %447 = vmatprep.subr.mxu0 0.0
    %448 = vmatpush1.msra.mxu0 %v409
    %449 = vmatprep.subr.mxu0 0.0
    %450 = vmatpush1.msra.mxu0 0.0
    %451 = vmatprep.subr.mxu0 0.0
    %452 = vmatpush1.msra.mxu0 0.0
    %453 = vmatprep.subr.mxu0 0.0
    %454 = vmatpush1.msra.mxu0 0.0
    %455 = vmatprep.subr.mxu0 0.0
    %456 = vmatpush1.msra.mxu0 0.0
    %457 = vmatprep.subr.mxu0 0.0
    %458 = vmatpush1.msra.mxu0 0.0
    %459 = vmatprep.subr.mxu0 0.0
    %460 = vmatpush1.msra.mxu0 0.0
    %461 = vmatprep.subr.mxu0 0.0
    %462 = vmatpush1.msra.mxu0 0.0
    %463 = vmatprep.subr.mxu0 0.0
    %464 = vmatpush1.msra.mxu0 0.0
    %465 = vmatprep.subr.mxu0 0.0
    %466 = vmatpush1.msra.mxu0 0.0
    %467 = vmatprep.subr.mxu0 0.0
    %468 = vmatpush1.msra.mxu0 0.0
    %469 = vmatprep.subr.mxu0 0.0
    %470 = vmatpush1.msra.mxu0 0.0
    %471 = vmatprep.subr.mxu0 0.0
    %472 = vmatpush1.msra.mxu0 0.0
    %473 = vmatprep.subr.mxu0 0.0
    %474 = vmatpush1.msra.mxu0 0.0
    %475 = vmatprep.mubr.f32.mxu0 %v405
    %476 = vmatmul.mubr.f32.gmra.mrb[0].mxu0 %v383
    %v477 = vpop.f32.mrb[0].mxu0
    %v478 = vadd.f32 0.0, %v477
    %v479 = vpop.f32.mrb[0].mxu0
    %480 = vdwg.mxu0
    %v481 = vlaneseq
    %v482 = vand.u32 %v481, 127
    %vm483 = vcmp.lt.s32.totalorder %v482, 32
    %v484 = vsel %vm483, %v478, -1e+30
    %485 = vmax.xlane.f32.xlu0 %v484
    %v486 = vpop.xlane.xlu0 %485
    %v487 = vsub.f32 %v484, %v486
    %v488 = vmul.f32 %v487, 1.442695
    %v489 = vpow.pop %v488
    %490 = vadd.xlane.f32.xlu0 %v489
    %v491 = vpop.xlane.xlu0 %490
    %v492 = vrcp.pop %v491
    %v493 = vmul.f32 %v489, %v492
    %494 = vst [vmem:[#allocation8] sm:$0xff] %v493
    // Predicated region
    $region26: #{tpu_custom_call.1} parent=1 // pred_check
      _
    $region27: #{tpu_custom_call.1} parent=1 // pred_check_branch
      %496 = sbr.rel (0) target = $region29
    $region28: #{tpu_custom_call.1} parent=1 // pred_region
      %s498 = ssub.s32 128, 128
      %499 = vsyncadd [#allocation4], %s498
      %s501 = sshll.u32 [#allocation8], 4
      %s502 = int_to_ptr.vmem [resolvable:$true] %s501
      %504 = dma.vmem_to_hbm [thread:$0]  %s502, 128, %s3, [#allocation4]
    $region29: #{tpu_custom_call.1} parent=1 // pred_fallthru
      _
    // Predicated region
    $region30: #{tpu_custom_call.1} parent=1 // pred_check
      _
    $region31: #{tpu_custom_call.1} parent=1 // pred_check_branch
      %506 = sbr.rel (0) target = $region33
    $region32: #{tpu_custom_call.1} parent=1 // pred_region
      %507 = dma.done [#allocation4], 128
    $region33: #{tpu_custom_call.1} parent=1 // pred_fallthru
      _
    %508 = vsyncpa [#allocation3], 1
    %509 = vsyncpa [#allocation6], 1
    %510 = vsyncpa [#allocation4], 1

</llo_original>
